<compile_context>
chip_gen: v5e
topology: v5e:2x2
jax: 0.10.0
libtpu: 0.0.40
codegen_flags: <defaults>
</compile_context>

<pallas_src>
import functools

import jax
import jax.numpy as jnp
from jax import lax
from jax.experimental import pallas as pl
from jax.experimental.pallas import tpu as pltpu


# ----------------------------------------------------------------------------
# Kernel 1: feature projection + attention logits (tiled over nodes).
# ----------------------------------------------------------------------------
def _project_kernel(h_ref, w_ref, alr_ref, arc_ref,
                    feat_ref, elt_ref, er_ref):
    # fc projection on the MXU: bf16 operands, f32 accumulation.
    h = h_ref[...].astype(jnp.bfloat16)                 # (T, F_in)
    w = w_ref[...].astype(jnp.bfloat16)                 # (F_in, H*F)
    feat = jnp.dot(h, w, preferred_element_type=jnp.float32)   # (T, H*F) f32

    # Attention logits for ALL heads as two small MXU matmuls:
    #   er   = feat @ A_r           (T, H)   -- dst term, row layout
    #   el^T = A_l @ feat^T         (H, T)   -- src term, already transposed
    er_ref[...] = jnp.dot(feat, arc_ref[...],
                          preferred_element_type=jnp.float32)
    elt_ref[...] = lax.dot_general(
        alr_ref[...], feat, (((1,), (1,)), ((), ())),
        preferred_element_type=jnp.float32)

    # feat is re-streamed by the aggregation kernel as the MXU RHS -> bf16.
    feat_ref[...] = feat.astype(jnp.bfloat16)


# ----------------------------------------------------------------------------
# Kernel 2: masked edge softmax (online) + aggregation, grid = (dst, src).
# ----------------------------------------------------------------------------
def _attn_agg_kernel(er_ref, elt_ref, adj_ref, feat_ref, out_ref,
                     m_ref, l_ref, acc_ref,
                     *, num_heads, out_feats, negative_slope, apply_elu):
    s = pl.program_id(1)

    @pl.when(s == 0)
    def _():
        # Finite floor (not -inf): a fully masked src tile leaves m at the
        # floor, so exp(-1e30 - m) still underflows to exactly 0.  Real
        # attention logits are O(1), never near -1e4.
        m_ref[...] = jnp.full(m_ref.shape, -1e4, m_ref.dtype)
        l_ref[...] = jnp.zeros_like(l_ref)
        acc_ref[...] = jnp.zeros_like(acc_ref)

    # Head-invariant work hoisted out of the head loop.
    mask = adj_ref[...].astype(jnp.float32) > 0.0       # (TD, TS)
    er = er_ref[...]                                    # (TD, H)   dst term
    elt = elt_ref[...]                                  # (H, TS)   src term
    feat = feat_ref[...]                                # (TS, H*F) bf16
    m_old = m_ref[...]
    l_old = l_ref[...]
    acc_old = acc_ref[...]

    fd = out_feats
    m_parts, l_parts, acc_parts = [], [], []
    for hd in range(num_heads):                         # few heads -> unrolled
        e = er[:, hd:hd + 1] + elt[hd:hd + 1, :]        # (TD, TS) broadcast add
        e = jnp.where(e > 0, e, negative_slope * e)     # LeakyReLU
        e = jnp.where(mask, e, jnp.float32(-1e30))      # single mask per head

        m_h_old = m_old[:, hd:hd + 1]
        m_h = jnp.maximum(m_h_old, jnp.max(e, axis=-1, keepdims=True))
        scale = jnp.exp(m_h_old - m_h)                  # online-softmax rescale
        p = jnp.exp(e - m_h)                            # masked entries -> 0.0

        l_parts.append(scale * l_old[:, hd:hd + 1]
                       + jnp.sum(p, axis=-1, keepdims=True))
        acc_parts.append(
            scale * acc_old[:, hd * fd:(hd + 1) * fd]
            + jnp.dot(p.astype(jnp.bfloat16), feat[:, hd * fd:(hd + 1) * fd],
                      preferred_element_type=jnp.float32))
        m_parts.append(m_h)

    # One wide store per scratch buffer instead of H narrow ones.
    m_ref[...] = jnp.concatenate(m_parts, axis=-1)
    l_ref[...] = jnp.concatenate(l_parts, axis=-1)
    acc_ref[...] = jnp.concatenate(acc_parts, axis=-1)

    @pl.when(s == pl.num_programs(1) - 1)
    def _():
        acc = acc_ref[...]
        l = l_ref[...]
        parts = []
        for hd in range(num_heads):
            # Isolated dst node (no incoming edges): l == 0, acc == 0 -> 0 out.
            inv = pl.reciprocal(jnp.maximum(l[:, hd:hd + 1], 1e-20),
                                approx=True)            # EUP, not VALU divide
            parts.append(acc[:, hd * fd:(hd + 1) * fd] * inv)
        rst = jnp.concatenate(parts, axis=-1)           # (TD, H*F)
        if apply_elu:
            # exp(x)-1 on the negative branch; positive branch selected by where.
            rst = jnp.where(rst > 0, rst, jnp.exp(rst) - 1.0)
        out_ref[...] = rst                              # single lane-dense store


# ----------------------------------------------------------------------------
# Layer wrapper.
# ----------------------------------------------------------------------------
def _pick_tile(n, preferred):
    # Tiles must evenly divide N (fallback: whole graph as one tile).
    return preferred if (n >= preferred and n % preferred == 0) else n


def gatconv(h, w, attn_l, attn_r, adj, *, num_heads, out_feats,
            negative_slope, apply_elu, tile=128):
    """One GATConv layer (feat_drop = attn_drop = 0, residual = False)."""
    n, f_in = h.shape
    hf = num_heads * out_feats

    # Block-structured attention parameter matrices so el/er for all heads are
    # single MXU matmuls inside the kernel (static head count, built host-side).
    a_l_rows = jnp.zeros((num_heads, hf), jnp.float32)
    a_r_cols = jnp.zeros((hf, num_heads), jnp.float32)
    for hd in range(num_heads):
        a_l_rows = a_l_rows.at[hd, hd * out_feats:(hd + 1) * out_feats].set(attn_l[hd])
        a_r_cols = a_r_cols.at[hd * out_feats:(hd + 1) * out_feats, hd].set(attn_r[hd])

    tp = _pick_tile(n, tile)
    feat, el_t, er = pl.pallas_call(
        _project_kernel,
        out_shape=(jax.ShapeDtypeStruct((n, hf), jnp.bfloat16),
                   jax.ShapeDtypeStruct((num_heads, n), jnp.float32),
                   jax.ShapeDtypeStruct((n, num_heads), jnp.float32)),
        grid=(n // tp,),
        in_specs=[pl.BlockSpec((tp, f_in), lambda i: (i, 0)),
                  pl.BlockSpec((f_in, hf), lambda i: (0, 0)),
                  pl.BlockSpec((num_heads, hf), lambda i: (0, 0)),
                  pl.BlockSpec((hf, num_heads), lambda i: (0, 0))],
        out_specs=(pl.BlockSpec((tp, hf), lambda i: (i, 0)),
                   pl.BlockSpec((num_heads, tp), lambda i: (0, i)),
                   pl.BlockSpec((tp, num_heads), lambda i: (i, 0))),
        compiler_params=pltpu.CompilerParams(
            dimension_semantics=("parallel",)),
    )(h, w, a_l_rows, a_r_cols)

    td = _pick_tile(n, tile)
    ts = _pick_tile(n, tile)
    kernel = functools.partial(
        _attn_agg_kernel, num_heads=num_heads, out_feats=out_feats,
        negative_slope=negative_slope, apply_elu=apply_elu)
    out = pl.pallas_call(
        kernel,
        out_shape=jax.ShapeDtypeStruct((n, hf), jnp.float32),
        grid=(n // td, n // ts),
        in_specs=[pl.BlockSpec((td, num_heads), lambda d, s: (d, 0)),   # er
                  pl.BlockSpec((num_heads, ts), lambda d, s: (0, s)),   # el^T
                  pl.BlockSpec((td, ts), lambda d, s: (d, s)),          # adj int8
                  pl.BlockSpec((ts, hf), lambda d, s: (s, 0))],         # feat bf16
        out_specs=pl.BlockSpec((td, hf), lambda d, s: (d, 0)),
        scratch_shapes=[pltpu.VMEM((td, num_heads), jnp.float32),       # running max
                        pltpu.VMEM((td, num_heads), jnp.float32),       # running denom
                        pltpu.VMEM((td, hf), jnp.float32)],             # accumulator
        compiler_params=pltpu.CompilerParams(
            dimension_semantics=("parallel", "arbitrary")),
    )(er, el_t, adj, feat)
    return out


def gat_forward(x, params, adj, negative_slope):
    """Replicates GAT.forward: flatten heads on hidden layers, mean on last."""
    n = x.shape[0]
    h = x
    num_layers = len(params)
    for l, p in enumerate(params):
        is_last = (l == num_layers - 1)
        out = gatconv(h, p["w"], p["attn_l"], p["attn_r"], adj,
                      num_heads=p["H"], out_feats=p["F"],
                      negative_slope=negative_slope,
                      apply_elu=not is_last)             # activation=F.elu except last
        if not is_last:
            h = out                                      # == h.flatten(1)
        else:
            h = out.reshape(n, p["H"], p["F"]).mean(axis=1)   # == h.mean(1)
    return h


# ----------------------------------------------------------------------------
# Pure-jnp reference (f32) for correctness checking.
# ----------------------------------------------------------------------------
def gat_reference(x, params, adj, negative_slope):
    h = x
    adjm = adj.astype(jnp.float32) > 0
    num_layers = len(params)
    for l, p in enumerate(params):
        nh, fd = p["H"], p["F"]
        feat = (h @ p["w"]).reshape(-1, nh, fd)
        el = jnp.einsum("nhf,hf->nh", feat, p["attn_l"])     # src term
        er = jnp.einsum("nhf,hf->nh", feat, p["attn_r"])     # dst term
        e = er[:, None, :] + el[None, :, :]                  # (dst, src, H)
        e = jnp.where(e > 0, e, negative_slope * e)
        e = jnp.where(adjm[:, :, None], e, -jnp.inf)
        a = jax.nn.softmax(e, axis=1)
        a = jnp.where(adjm[:, :, None], a, 0.0)
        out = jnp.einsum("dsh,shf->dhf", a, feat)
        if l != num_layers - 1:
            out = jnp.where(out > 0, out, jnp.expm1(out))
            h = out.reshape(-1, nh * fd)
        else:
            h = out.mean(axis=1)
    return h


if __name__ == "__main__":
    key = jax.random.PRNGKey(0)

    # Small-but-tileable config consistent with the module's constructor.
    N = 256                      # nodes in the graph g (2x2 grid of 128-tiles)
    num_layers = 2
    in_dim = 16
    num_hidden = 16
    num_classes = 8
    heads = [2, 1]
    negative_slope = 0.2
    # feat_drop / attn_drop = 0.0 (inference), residual = False.
    # TODO(synk): residual res_fc path not exercised (residual=False config).

    # Deterministic graph, adjacency stored as int8, adj[dst, src]:
    # self-loops + bidirectional ring + a few random long-range edges.
    idx = jnp.arange(N)
    adj = jnp.eye(N, dtype=jnp.int8)
    adj = adj.at[idx, (idx + 1) % N].set(1)
    adj = adj.at[idx, (idx - 1) % N].set(1)
    key, k_src, k_dst = jax.random.split(key, 3)
    rnd_src = jax.random.randint(k_src, (4 * N,), 0, N)
    rnd_dst = jax.random.randint(k_dst, (4 * N,), 0, N)
    adj = adj.at[rnd_dst, rnd_src].set(1)

    # Layer shapes, matching GAT.__init__ for num_layers=2.
    layer_dims = [
        (in_dim, num_hidden, heads[0]),                  # hidden layer, ELU
        (num_hidden * heads[0], num_classes, heads[1]),  # output layer, no act
    ]
    params = []
    for (f_in, f_out, n_heads) in layer_dims:
        key, k1, k2, k3 = jax.random.split(key, 4)
        scale = (2.0 / (f_in + f_out)) ** 0.5            # xavier-ish, deterministic
        params.append({
            "w": jax.random.normal(k1, (f_in, n_heads * f_out), jnp.float32) * scale,
            "attn_l": jax.random.normal(k2, (n_heads, f_out), jnp.float32) * 0.1,
            "attn_r": jax.random.normal(k3, (n_heads, f_out), jnp.float32) * 0.1,
            "H": n_heads,
            "F": f_out,
        })

    key, kx = jax.random.split(key)
    x = jax.random.normal(kx, (N, in_dim), jnp.float32)

    out = jax.block_until_ready(gat_forward(x, params, adj, negative_slope))
    ref = jax.block_until_ready(gat_reference(x, params, adj, negative_slope))

    assert out.shape == (N, num_classes), out.shape
    assert bool(jnp.all(jnp.isfinite(out)))
    max_err = float(jnp.max(jnp.abs(out - ref)))
    assert max_err < 1e-1, f"max abs error vs f32 reference: {max_err}"
    print("KERNEL_OK")
</pallas_src>

<mosaic_0001>
module attributes {stable_mosaic.version = 11 : i64} {
  func.func @_project_kernel(%arg0: i32, %arg1: memref<128x16xf32, #tpu.memory_space<vmem>>, %arg2: memref<16x32xf32, #tpu.memory_space<vmem>>, %arg3: memref<2x32xf32, #tpu.memory_space<vmem>>, %arg4: memref<32x2xf32, #tpu.memory_space<vmem>>, %arg5: memref<128x32xbf16, #tpu.memory_space<vmem>>, %arg6: memref<2x128xf32, #tpu.memory_space<vmem>>, %arg7: memref<128x2xf32, #tpu.memory_space<vmem>>) attributes {dimension_semantics = [#tpu.dimension_semantics<parallel>], iteration_bounds = array<i64: 2>, scalar_prefetch = 0 : i64, scratch_operands = 0 : i64, tpu.core_type = #tpu.core_type<tc>, window_params = [{transform_indices = @transform_0, window_bounds = array<i64: 128, 16>}, {pipeline_mode = #tpu.pipeline_mode<synchronous>, transform_indices = @transform_1, window_bounds = array<i64: 16, 32>}, {pipeline_mode = #tpu.pipeline_mode<synchronous>, transform_indices = @transform_2, window_bounds = array<i64: 2, 32>}, {pipeline_mode = #tpu.pipeline_mode<synchronous>, transform_indices = @transform_3, window_bounds = array<i64: 32, 2>}, {transform_indices = @transform_4, window_bounds = array<i64: 128, 32>}, {transform_indices = @transform_5, window_bounds = array<i64: 2, 128>}, {transform_indices = @transform_6, window_bounds = array<i64: 128, 2>}]} {
    %c0 = arith.constant 0 : index
    %c0_0 = arith.constant 0 : index
    %0 = vector.load %arg1[%c0, %c0_0] : memref<128x16xf32, #tpu.memory_space<vmem>>, vector<128x16xf32>
    %1 = arith.truncf %0 : vector<128x16xf32> to vector<128x16xbf16>
    %c0_1 = arith.constant 0 : index
    %c0_2 = arith.constant 0 : index
    %2 = vector.load %arg2[%c0_1, %c0_2] : memref<16x32xf32, #tpu.memory_space<vmem>>, vector<16x32xf32>
    %3 = arith.truncf %2 : vector<16x32xf32> to vector<16x32xbf16>
    %cst = arith.constant dense<0.000000e+00> : vector<128x32xf32>
    %4 = tpu.matmul %1, %3, %cst {dimension_numbers = #tpu.dot_dimension_numbers<[1], [0], [0], [1], [0, 0, 1, 1], [], []>} : vector<128x16xbf16>, vector<16x32xbf16>, vector<128x32xf32> -> vector<128x32xf32>
    %c0_3 = arith.constant 0 : index
    %c0_4 = arith.constant 0 : index
    %5 = vector.load %arg4[%c0_3, %c0_4] : memref<32x2xf32, #tpu.memory_space<vmem>>, vector<32x2xf32>
    %cst_5 = arith.constant dense<0.000000e+00> : vector<128x2xf32>
    %6 = tpu.matmul %4, %5, %cst_5 {dimension_numbers = #tpu.dot_dimension_numbers<[1], [0], [0], [1], [0, 0, 1, 1], [], []>} : vector<128x32xf32>, vector<32x2xf32>, vector<128x2xf32> -> vector<128x2xf32>
    %c0_6 = arith.constant 0 : index
    %c0_7 = arith.constant 0 : index
    %7 = vector.load %arg7[%c0_6, %c0_7] : memref<128x2xf32, #tpu.memory_space<vmem>>, vector<128x2xf32>
    tpu.vector_store %arg7[%c0_6, %c0_7], %6 {strides = array<i32>} : memref<128x2xf32, #tpu.memory_space<vmem>>, vector<128x2xf32>,
    %c0_8 = arith.constant 0 : index
    %c0_9 = arith.constant 0 : index
    %8 = vector.load %arg3[%c0_8, %c0_9] : memref<2x32xf32, #tpu.memory_space<vmem>>, vector<2x32xf32>
    %cst_10 = arith.constant dense<0.000000e+00> : vector<2x128xf32>
    %9 = tpu.matmul %8, %4, %cst_10 {dimension_numbers = #tpu.dot_dimension_numbers<[1], [1], [0], [0], [0, 0, 1, 0], [], []>} : vector<2x32xf32>, vector<128x32xf32>, vector<2x128xf32> -> vector<2x128xf32>
    %c0_11 = arith.constant 0 : index
    %c0_12 = arith.constant 0 : index
    %10 = vector.load %arg6[%c0_11, %c0_12] : memref<2x128xf32, #tpu.memory_space<vmem>>, vector<2x128xf32>
    tpu.vector_store %arg6[%c0_11, %c0_12], %9 {strides = array<i32>} : memref<2x128xf32, #tpu.memory_space<vmem>>, vector<2x128xf32>,
    %11 = arith.truncf %4 : vector<128x32xf32> to vector<128x32xbf16>
    %c0_13 = arith.constant 0 : index
    %c0_14 = arith.constant 0 : index
    %12 = vector.load %arg5[%c0_13, %c0_14] : memref<128x32xbf16, #tpu.memory_space<vmem>>, vector<128x32xbf16>
    tpu.vector_store %arg5[%c0_13, %c0_14], %11 {strides = array<i32>} : memref<128x32xbf16, #tpu.memory_space<vmem>>, vector<128x32xbf16>,
    return
  }
  func.func @transform_0(%arg0: i32) -> (i32, i32) {
    %c0_i32 = arith.constant 0 : i32
    %c0_i32_0 = arith.constant 0 : i32
    return %arg0, %c0_i32 : i32, i32
  }
  func.func @transform_1(%arg0: i32) -> (i32, i32) {
    %c0_i32 = arith.constant 0 : i32
    %c0_i32_0 = arith.constant 0 : i32
    %c0_i32_1 = arith.constant 0 : i32
    return %c0_i32, %c0_i32_0 : i32, i32
  }
  func.func @transform_2(%arg0: i32) -> (i32, i32) {
    %c0_i32 = arith.constant 0 : i32
    %c0_i32_0 = arith.constant 0 : i32
    %c0_i32_1 = arith.constant 0 : i32
    return %c0_i32, %c0_i32_0 : i32, i32
  }
  func.func @transform_3(%arg0: i32) -> (i32, i32) {
    %c0_i32 = arith.constant 0 : i32
    %c0_i32_0 = arith.constant 0 : i32
    %c0_i32_1 = arith.constant 0 : i32
    return %c0_i32, %c0_i32_0 : i32, i32
  }
  func.func @transform_4(%arg0: i32) -> (i32, i32) {
    %c0_i32 = arith.constant 0 : i32
    %c0_i32_0 = arith.constant 0 : i32
    return %arg0, %c0_i32 : i32, i32
  }
  func.func @transform_5(%arg0: i32) -> (i32, i32) {
    %c0_i32 = arith.constant 0 : i32
    %c0_i32_0 = arith.constant 0 : i32
    return %c0_i32, %arg0 : i32, i32
  }
  func.func @transform_6(%arg0: i32) -> (i32, i32) {
    %c0_i32 = arith.constant 0 : i32
    %c0_i32_0 = arith.constant 0 : i32
    return %arg0, %c0_i32 : i32, i32
  }
}

</mosaic_0001>

<llo_original>
// kernel: tpu_custom_call.1
$region0: #{tpu_custom_call.1}
  #allocation0 [shape = 'u32[]', space=smem, size = 0x4, offset = 0x4, fixed_abs, tag = 'smem constant byte address 0x4 - core index']
  #allocation1 [shape = 'u32[72,128]{1,0:T(1,128)}', space=vmem, size = 0x9000, scoped, tag = 'internal scratch']
  %s0 = inlined_call_operand.vmem [shape: f32[256,16], index: 0, kind: input, shape index: {}]
  %s1 = inlined_call_operand.vmem [shape: f32[16,32], index: 1, kind: input, shape index: {}]
  %s2 = inlined_call_operand.vmem [shape: f32[2,32], index: 2, kind: input, shape index: {}]
  %s3 = inlined_call_operand.vmem [shape: f32[32,2], index: 3, kind: input, shape index: {}]
  %s4 = inlined_call_operand.vmem [shape: bf16[256,32], index: 4, kind: output, shape index: {0}]
  %s5 = inlined_call_operand.hbm [shape: f32[2,256], index: 5, kind: output, shape index: {1}]
  %s6 = inlined_call_operand.vmem [shape: f32[256,2], index: 6, kind: output, shape index: {2}]
  %7 = xla_tuple %s4, %s5, %s6
  %s8 = sld [smem:[#allocation0]]
  $region65: #{tpu_custom_call.1} parent=0
    _
  %s10 = ssub.s32 1, %s8
  %s11 = scalar_select 0, %s10, %s8
  $region1: #{tpu_custom_call.1} parent=0
    #allocation2 [shape = 'u8[2048]{0}', space=vmem, size = 0x800, scoped, tag = 'output window, operand 1']
    #allocation3 [shape = 's32[2]{0}', space=sflag, size = 0x8, scoped, tag = 'scoped memory for tpu_custom_call.1']
    %12 = vsyncpa [#allocation3], 0
    %s13 = scalar_lea.sflag [#allocation3], 1
    %14 = vsyncpa %s13, 0
    loop: start=0, step=1, limit=4
    $region2: #{tpu_custom_call.1} parent=1 // loop_pre_header
      _
    $region3: #{tpu_custom_call.1} parent=1 // loop_header
      %s16 = sphi 0, %s20
      %p17 = scmp.ge.s32.totalorder %s16, 4
      %s26 = sphi 0, %s28
      %s29 = sphi 0, %s26
      %s30 = sphi 0, %s29
      %s46 = sphi 0, %s30
      %s50 = sphi 0, %s50
      %s52 = sphi 0, %s50
      %s53 = sphi 0, %s52
      %s67 = sphi 0, %s53
      %s71 = sphi 0, %s71
      %s73 = sphi 0, %s71
      %s74 = sphi 0, %s73
      %s88 = sphi 0, %s74
      %s92 = sphi 0, %s92
      %s94 = sphi 0, %s92
      %s95 = sphi 0, %s94
      %s109 = sphi 0, %s95
      %s115 = sphi 0, %s117
      %s118 = sphi 0, %s115
      %s119 = sphi 0, %s118
      %s135 = sphi 0, %s119
      %s141 = sphi 0, %s143
      %s144 = sphi 0, %s141
      %s145 = sphi 0, %s144
      %s161 = sphi 0, %s145
      %s167 = sphi 0, %s169
      %s170 = sphi 0, %s167
      %s171 = sphi 0, %s170
      %s187 = sphi 0, %s171
    $region4: #{tpu_custom_call.1} parent=1 // loop_header_branch
      %19 = sbr.rel (%p17) target = $region8
    $region5: #{tpu_custom_call.1} parent=1 // loop_body
      %s21 = ssub.s32 %s16, 1
      %s22 = ssub.s32 %s16, 2
      %s23 = sadd.s32 %s16, 1
      %s24 = ssub.s32 %s16, %s23
      %p25 = scmp.eq.s32.totalorder %s24, 0
      %s27 = sadd.s32 %s26, 1
      %s28 = scalar_select %p25, %s26, %s27
      %p31 = pneg %p25
      %p32 = scmp.eq.s32.totalorder %s16, 1
      %p33 = por %p31, %p32
      %p34 = scmp.ne.s32.totalorder %s26, %s29
      %p35 = scmp.eq.s32.totalorder %s16, 0
      %p36 = por %p34, %p35
      %p37 = scmp.ne.s32.totalorder %s26, %s29
      %p38 = scmp.eq.s32.totalorder %s21, 1
      %p39 = por %p37, %p38
      %p40 = scmp.ne.s32.totalorder %s29, %s30
      %p41 = scmp.eq.s32.totalorder %s21, 0
      %p42 = por %p40, %p41
      %p43 = scmp.ne.s32.totalorder %s29, %s30
      %p44 = scmp.eq.s32.totalorder %s22, 1
      %p45 = por %p43, %p44
      %p47 = scmp.ne.s32.totalorder %s30, %s46
      %p48 = scmp.eq.s32.totalorder %s22, 0
      %p49 = por %p47, %p48
      %s51 = sadd.s32 %s50, 1
      %p54 = scmp.eq.s32.totalorder %s16, 1
      %p55 = scmp.ne.s32.totalorder %s50, %s52
      %p56 = scmp.eq.s32.totalorder %s16, 0
      %p57 = por %p55, %p56
      %p58 = scmp.ne.s32.totalorder %s50, %s52
      %p59 = scmp.eq.s32.totalorder %s21, 1
      %p60 = por %p58, %p59
      %p61 = scmp.ne.s32.totalorder %s52, %s53
      %p62 = scmp.eq.s32.totalorder %s21, 0
      %p63 = por %p61, %p62
      %p64 = scmp.ne.s32.totalorder %s52, %s53
      %p65 = scmp.eq.s32.totalorder %s22, 1
      %p66 = por %p64, %p65
      %p68 = scmp.ne.s32.totalorder %s53, %s67
      %p69 = scmp.eq.s32.totalorder %s22, 0
      %p70 = por %p68, %p69
      %s72 = sadd.s32 %s71, 1
      %p75 = scmp.eq.s32.totalorder %s16, 1
      %p76 = scmp.ne.s32.totalorder %s71, %s73
      %p77 = scmp.eq.s32.totalorder %s16, 0
      %p78 = por %p76, %p77
      %p79 = scmp.ne.s32.totalorder %s71, %s73
      %p80 = scmp.eq.s32.totalorder %s21, 1
      %p81 = por %p79, %p80
      %p82 = scmp.ne.s32.totalorder %s73, %s74
      %p83 = scmp.eq.s32.totalorder %s21, 0
      %p84 = por %p82, %p83
      %p85 = scmp.ne.s32.totalorder %s73, %s74
      %p86 = scmp.eq.s32.totalorder %s22, 1
      %p87 = por %p85, %p86
      %p89 = scmp.ne.s32.totalorder %s74, %s88
      %p90 = scmp.eq.s32.totalorder %s22, 0
      %p91 = por %p89, %p90
      %s93 = sadd.s32 %s92, 1
      %p96 = scmp.eq.s32.totalorder %s16, 1
      %p97 = scmp.ne.s32.totalorder %s92, %s94
      %p98 = scmp.eq.s32.totalorder %s16, 0
      %p99 = por %p97, %p98
      %p100 = scmp.ne.s32.totalorder %s92, %s94
      %p101 = scmp.eq.s32.totalorder %s21, 1
      %p102 = por %p100, %p101
      %p103 = scmp.ne.s32.totalorder %s94, %s95
      %p104 = scmp.eq.s32.totalorder %s21, 0
      %p105 = por %p103, %p104
      %p106 = scmp.ne.s32.totalorder %s94, %s95
      %p107 = scmp.eq.s32.totalorder %s22, 1
      %p108 = por %p106, %p107
      %p110 = scmp.ne.s32.totalorder %s95, %s109
      %p111 = scmp.eq.s32.totalorder %s22, 0
      %p112 = por %p110, %p111
      %s113 = ssub.s32 %s16, %s23
      %p114 = scmp.eq.s32.totalorder %s113, 0
      %s116 = sadd.s32 %s115, 1
      %s117 = scalar_select %p114, %s115, %s116
      %p120 = pneg %p114
      %p121 = scmp.eq.s32.totalorder %s16, 1
      %p122 = por %p120, %p121
      %p123 = scmp.ne.s32.totalorder %s115, %s118
      %p124 = scmp.eq.s32.totalorder %s16, 0
      %p125 = por %p123, %p124
      %p126 = scmp.ne.s32.totalorder %s115, %s118
      %p127 = scmp.eq.s32.totalorder %s21, 1
      %p128 = por %p126, %p127
      %p129 = scmp.ne.s32.totalorder %s118, %s119
      %p130 = scmp.eq.s32.totalorder %s21, 0
      %p131 = por %p129, %p130
      %p132 = scmp.ne.s32.totalorder %s118, %s119
      %p133 = scmp.eq.s32.totalorder %s22, 1
      %p134 = por %p132, %p133
      %p136 = scmp.ne.s32.totalorder %s119, %s135
      %p137 = scmp.eq.s32.totalorder %s22, 0
      %p138 = por %p136, %p137
      %s139 = ssub.s32 %s16, %s23
      %p140 = scmp.eq.s32.totalorder %s139, 0
      %s142 = sadd.s32 %s141, 1
      %s143 = scalar_select %p140, %s141, %s142
      %p146 = pneg %p140
      %p147 = scmp.eq.s32.totalorder %s16, 1
      %p148 = por %p146, %p147
      %p149 = scmp.ne.s32.totalorder %s141, %s144
      %p150 = scmp.eq.s32.totalorder %s16, 0
      %p151 = por %p149, %p150
      %p152 = scmp.ne.s32.totalorder %s141, %s144
      %p153 = scmp.eq.s32.totalorder %s21, 1
      %p154 = por %p152, %p153
      %p155 = scmp.ne.s32.totalorder %s144, %s145
      %p156 = scmp.eq.s32.totalorder %s21, 0
      %p157 = por %p155, %p156
      %p158 = scmp.ne.s32.totalorder %s144, %s145
      %p159 = scmp.eq.s32.totalorder %s22, 1
      %p160 = por %p158, %p159
      %p162 = scmp.ne.s32.totalorder %s145, %s161
      %p163 = scmp.eq.s32.totalorder %s22, 0
      %p164 = por %p162, %p163
      %s165 = ssub.s32 %s16, %s23
      %p166 = scmp.eq.s32.totalorder %s165, 0
      %s168 = sadd.s32 %s167, 1
      %s169 = scalar_select %p166, %s167, %s168
      %p172 = pneg %p166
      %p173 = scmp.eq.s32.totalorder %s16, 1
      %p174 = por %p172, %p173
      %p175 = scmp.ne.s32.totalorder %s167, %s170
      %p176 = scmp.eq.s32.totalorder %s16, 0
      %p177 = por %p175, %p176
      %p178 = scmp.ne.s32.totalorder %s167, %s170
      %p179 = scmp.eq.s32.totalorder %s21, 1
      %p180 = por %p178, %p179
      %p181 = scmp.ne.s32.totalorder %s170, %s171
      %p182 = scmp.eq.s32.totalorder %s21, 0
      %p183 = por %p181, %p182
      %p184 = scmp.ne.s32.totalorder %s170, %s171
      %p185 = scmp.eq.s32.totalorder %s22, 1
      %p186 = por %p184, %p185
      %p188 = scmp.ne.s32.totalorder %s171, %s187
      %p189 = scmp.eq.s32.totalorder %s22, 0
      %p190 = por %p188, %p189
      %p191 = scmp.le.s32.totalorder 1, %s16
      %p192 = scmp.lt.s32.totalorder %s16, 3
      %p193 = pnand %p191, %p192
      %p194 = pneg %p193
      // Predicated region
      $region9: #{tpu_custom_call.1} parent=5 // pred_check
        _
      $region10: #{tpu_custom_call.1} parent=5 // pred_check_branch
        %196 = sbr.rel (%p193) target = $region12
      $region11: #{tpu_custom_call.1} parent=5 // pred_region
        %s197 = ssub.s32 %s16, 1
        // Predicated region
        $region13: #{tpu_custom_call.1} parent=11 // pred_check
          %p198 = pneg %p63
        $region14: #{tpu_custom_call.1} parent=11 // pred_check_branch
          %200 = sbr.rel (%p198) target = $region16
        $region15: #{tpu_custom_call.1} parent=11 // pred_region
          _
        $region16: #{tpu_custom_call.1} parent=11 // pred_fallthru
          _
        // Predicated region
        $region17: #{tpu_custom_call.1} parent=11 // pred_check
          %p201 = pneg %p84
        $region18: #{tpu_custom_call.1} parent=11 // pred_check_branch
          %203 = sbr.rel (%p201) target = $region20
        $region19: #{tpu_custom_call.1} parent=11 // pred_region
          _
        $region20: #{tpu_custom_call.1} parent=11 // pred_fallthru
          _
        // Predicated region
        $region21: #{tpu_custom_call.1} parent=11 // pred_check
          %p204 = pneg %p105
        $region22: #{tpu_custom_call.1} parent=11 // pred_check_branch
          %206 = sbr.rel (%p204) target = $region24
        $region23: #{tpu_custom_call.1} parent=11 // pred_region
          _
        $region24: #{tpu_custom_call.1} parent=11 // pred_fallthru
          _
      $region12: #{tpu_custom_call.1} parent=5 // pred_fallthru
        _
      %p207 = scmp.lt.s32.totalorder %s16, 2
      // Predicated region
      $region25: #{tpu_custom_call.1} parent=5 // pred_check
        %p208 = pneg %p207
      $region26: #{tpu_custom_call.1} parent=5 // pred_check_branch
        %210 = sbr.rel (%p208) target = $region28
      $region27: #{tpu_custom_call.1} parent=5 // pred_region
        // Predicated region
        $region29: #{tpu_custom_call.1} parent=27 // pred_check
          %p211 = pneg %p36
        $region30: #{tpu_custom_call.1} parent=27 // pred_check_branch
          %213 = sbr.rel (%p211) target = $region32
        $region31: #{tpu_custom_call.1} parent=27 // pred_region
          %s214 = smul.u32 16, %s16
          %p215 = scmp.lt.s32.totalorder %s214, 31
          %s216 = scalar_select %p215, %s214, 31
          %s217 = smul.addr %s216, 8
          %s218 = scalar_lea.vmem %s0, %s217
          %s219 = smul.u32 16, %s16
        $region32: #{tpu_custom_call.1} parent=27 // pred_fallthru
          _
      $region28: #{tpu_custom_call.1} parent=5 // pred_fallthru
        _
      %p220 = scmp.le.s32.totalorder 1, %s16
      %p221 = scmp.lt.s32.totalorder %s16, 3
      %p222 = pnand %p220, %p221
      %p223 = pneg %p222
      // Predicated region
      $region33: #{tpu_custom_call.1} parent=5 // pred_check
        _
      $region34: #{tpu_custom_call.1} parent=5 // pred_check_branch
        %225 = sbr.rel (%p222) target = $region36
      $region35: #{tpu_custom_call.1} parent=5 // pred_region
        %s226 = ssub.s32 %s16, 1
        %s227 = smul.u32 16, %s21
        %p228 = scmp.lt.s32.totalorder %s227, 31
        %s229 = scalar_select %p228, %s227, 31
        %s230 = smul.addr %s229, 8
        %s231 = scalar_lea.vmem %s0, %s230
        %p232 = pneg %p42
        %p233 = pneg %p39
        %p234 = pneg %p63
        %p235 = pneg %p60
        %p236 = pneg %p84
        %p237 = pneg %p81
        %p238 = pneg %p105
        %p239 = pneg %p102
        %p240 = pneg %p131
        %p241 = pneg %p128
        %s242 = smul.u32 16, %s21
        %p243 = scmp.lt.s32.totalorder %s242, 31
        %s244 = scalar_select %p243, %s242, 31
        %s245 = smul.addr %s244, 4
        %s246 = scalar_lea.vmem %s4, %s245
        %p247 = pneg %p157
        %p248 = pneg %p154
        %s249 = sand.u32 %s144, 1
        %s250 = scalar_lea.sflag [#allocation3], %s249
        %s251 = sand.u32 %s144, 1
        %s252 = smul.addr %s251, 2
        %s253 = scalar_lea.vmem [#allocation2], %s252
        %p254 = pneg %p183
        %p255 = pneg %p180
        %s256 = smul.u32 16, %s21
        %p257 = scmp.lt.s32.totalorder %s256, 31
        %s258 = scalar_select %p257, %s256, 31
        %s259 = smul.addr %s258, 8
        %s260 = scalar_lea.vmem %s6, %s259
        %s261 = smul.u32 16, %s21
        %p262 = scmp.lt.s32.totalorder %s261, 31
        %s263 = scalar_select %p262, %s261, 31
        %s264 = smul.addr %s263, 8
        %s265 = scalar_lea.vmem %s0, %s264
        %s266 = smul.u32 16, %s21
        %s267 = smul.u32 16, %s21
        %p268 = scmp.lt.s32.totalorder %s267, 31
        %s269 = scalar_select %p268, %s267, 31
        %s270 = smul.addr %s269, 4
        %s271 = scalar_lea.vmem %s4, %s270
        %s272 = smul.u32 16, %s21
        %s273 = smul.u32 16, %s21
        %p274 = scmp.lt.s32.totalorder %s273, 31
        %s275 = scalar_select %p274, %s273, 31
        %s276 = smul.addr %s275, 8
        %s277 = scalar_lea.vmem %s6, %s276
        %s278 = smul.u32 16, %s21
        %v280 = vld [vmem:[%s265] sm:$0xff]
        %v281 = vld [vmem:[%s265 + $0x8] sm:$0xff]
        %v282 = vld [vmem:[%s265 + $0x10] sm:$0xff]
        %v283 = vld [vmem:[%s265 + $0x18] sm:$0xff]
        %v284 = vld [vmem:[%s265 + $0x20] sm:$0xff]
        %v285 = vld [vmem:[%s265 + $0x28] sm:$0xff]
        %v286 = vld [vmem:[%s265 + $0x30] sm:$0xff]
        %v287 = vld [vmem:[%s265 + $0x38] sm:$0xff]
        %v288 = vld [vmem:[%s265 + $0x40] sm:$0xff]
        %v289 = vld [vmem:[%s265 + $0x48] sm:$0xff]
        %v290 = vld [vmem:[%s265 + $0x50] sm:$0xff]
        %v291 = vld [vmem:[%s265 + $0x58] sm:$0xff]
        %v292 = vld [vmem:[%s265 + $0x60] sm:$0xff]
        %v293 = vld [vmem:[%s265 + $0x68] sm:$0xff]
        %v294 = vld [vmem:[%s265 + $0x70] sm:$0xff]
        %v295 = vld [vmem:[%s265 + $0x78] sm:$0xff]
        %v296 = vpack.c.bf16 %v281, %v280
        %v297 = vpack.c.bf16 %v283, %v282
        %v298 = vpack.c.bf16 %v285, %v284
        %v299 = vpack.c.bf16 %v287, %v286
        %v300 = vpack.c.bf16 %v289, %v288
        %v301 = vpack.c.bf16 %v291, %v290
        %v302 = vpack.c.bf16 %v293, %v292
        %v303 = vpack.c.bf16 %v295, %v294
        %v304 = vld [vmem:[%s1] sm:$0xff]
        %v305 = vld [vmem:[%s1 + $0x8] sm:$0xff]
        %v306 = vpack.c.bf16 %v305, %v304
        %vm307 = vcmask 130048
        %v309 = vsel %vm307, %v296, 0
        %v312 = vsel %vm307, %v297, 0
        %v315 = vsel %vm307, %v298, 0
        %v318 = vsel %vm307, %v299, 0
        %v321 = vsel %vm307, %v300, 0
        %v324 = vsel %vm307, %v301, 0
        %v327 = vsel %vm307, %v302, 0
        %v330 = vsel %vm307, %v303, 0
        %332 = vmatpush.bf16.msra.mxu0 0
        %333 = vmatpush.bf16.msra.mxu0 0
        %334 = vmatpush.bf16.msra.mxu0 0
        %335 = vmatpush.bf16.msra.mxu0 0
        %336 = vmatpush.bf16.msra.mxu0 0
        %337 = vmatpush.bf16.msra.mxu0 0
        %338 = vmatpush.bf16.msra.mxu0 0
        %339 = vmatpush.bf16.msra.mxu0 %v306
        %340 = vmatmul.bf16.gmra.mxu0 %v309
        %v341 = vpop.f32.mrf.mxu0
        %v342 = vadd.f32 0.0, %v341
        %v343 = vpop.f32.mrf.mxu0
        %v344 = vadd.f32 0.0, %v343
        %345 = vmatmul.bf16.gmra.mxu0 %v312
        %v346 = vpop.f32.mrf.mxu0
        %v347 = vadd.f32 0.0, %v346
        %v348 = vpop.f32.mrf.mxu0
        %v349 = vadd.f32 0.0, %v348
        %350 = vmatmul.bf16.gmra.mxu0 %v315
        %v351 = vpop.f32.mrf.mxu0
        %v352 = vadd.f32 0.0, %v351
        %v353 = vpop.f32.mrf.mxu0
        %v354 = vadd.f32 0.0, %v353
        %355 = vmatmul.bf16.gmra.mxu0 %v318
        %v356 = vpop.f32.mrf.mxu0
        %v357 = vadd.f32 0.0, %v356
        %v358 = vpop.f32.mrf.mxu0
        %v359 = vadd.f32 0.0, %v358
        %360 = vmatmul.bf16.gmra.mxu0 %v321
        %v361 = vpop.f32.mrf.mxu0
        %v362 = vadd.f32 0.0, %v361
        %v363 = vpop.f32.mrf.mxu0
        %v364 = vadd.f32 0.0, %v363
        %365 = vmatmul.bf16.gmra.mxu0 %v324
        %v366 = vpop.f32.mrf.mxu0
        %v367 = vadd.f32 0.0, %v366
        %v368 = vpop.f32.mrf.mxu0
        %v369 = vadd.f32 0.0, %v368
        %370 = vmatmul.bf16.gmra.mxu0 %v327
        %v371 = vpop.f32.mrf.mxu0
        %v372 = vadd.f32 0.0, %v371
        %v373 = vpop.f32.mrf.mxu0
        %v374 = vadd.f32 0.0, %v373
        %375 = vmatmul.bf16.gmra.mxu0 %v330
        %v376 = vpop.f32.mrf.mxu0
        %v377 = vadd.f32 0.0, %v376
        %v378 = vpop.f32.mrf.mxu0
        %v379 = vadd.f32 0.0, %v378
        %380 = vdwg.mxu0
        %v381 = vld [vmem:[%s3] sm:$0xff]
        %v382 = vld [vmem:[%s3 + $0x8] sm:$0xff]
        %v383 = vld [vmem:[%s3 + $0x10] sm:$0xff]
        %v384 = vld [vmem:[%s3 + $0x18] sm:$0xff]
        %vm385 = vcmask 261120
        %v387 = vsel %vm385, %v342, 0
        %v390 = vsel %vm385, %v344, 0
        %v393 = vsel %vm385, %v347, 0
        %v396 = vsel %vm385, %v349, 0
        %v399 = vsel %vm385, %v352, 0
        %v402 = vsel %vm385, %v354, 0
        %v405 = vsel %vm385, %v357, 0
        %v408 = vsel %vm385, %v359, 0
        %v411 = vsel %vm385, %v362, 0
        %v414 = vsel %vm385, %v364, 0
        %v417 = vsel %vm385, %v367, 0
        %v420 = vsel %vm385, %v369, 0
        %v423 = vsel %vm385, %v372, 0
        %v426 = vsel %vm385, %v374, 0
        %v429 = vsel %vm385, %v377, 0
        %v432 = vsel %vm385, %v379, 0
        %434 = vmatpush.msra.mxu0 0.0
        %435 = vmatpush.msra.mxu0 0.0
        %436 = vmatpush.msra.mxu0 0.0
        %437 = vmatpush.msra.mxu0 0.0
        %438 = vmatpush.msra.mxu0 0.0
        %439 = vmatpush.msra.mxu0 0.0
        %440 = vmatpush.msra.mxu0 0.0
        %441 = vmatpush.msra.mxu0 0.0
        %442 = vmatpush.msra.mxu0 0.0
        %443 = vmatpush.msra.mxu0 0.0
        %444 = vmatpush.msra.mxu0 0.0
        %445 = vmatpush.msra.mxu0 0.0
        %446 = vmatpush.msra.mxu0 %v384
        %447 = vmatpush.msra.mxu0 %v383
        %448 = vmatpush.msra.mxu0 %v382
        %449 = vmatpush.msra.mxu0 %v381
        %450 = vmatmul.f32.gmra.mxu0 %v387
        %v451 = vpop.f32.mrf.mxu0
        %v452 = vadd.f32 0.0, %v451
        %453 = vmatmul.f32.gmra.mxu0 %v390
        %v454 = vpop.f32.mrf.mxu0
        %v455 = vadd.f32 0.0, %v454
        %456 = vmatmul.f32.gmra.mxu0 %v393
        %v457 = vpop.f32.mrf.mxu0
        %v458 = vadd.f32 0.0, %v457
        %459 = vmatmul.f32.gmra.mxu0 %v396
        %v460 = vpop.f32.mrf.mxu0
        %v461 = vadd.f32 0.0, %v460
        %462 = vmatmul.f32.gmra.mxu0 %v399
        %v463 = vpop.f32.mrf.mxu0
        %v464 = vadd.f32 0.0, %v463
        %465 = vmatmul.f32.gmra.mxu0 %v402
        %v466 = vpop.f32.mrf.mxu0
        %v467 = vadd.f32 0.0, %v466
        %468 = vmatmul.f32.gmra.mxu0 %v405
        %v469 = vpop.f32.mrf.mxu0
        %v470 = vadd.f32 0.0, %v469
        %471 = vmatmul.f32.gmra.mxu0 %v408
        %v472 = vpop.f32.mrf.mxu0
        %v473 = vadd.f32 0.0, %v472
        %474 = vmatmul.f32.gmra.mxu0 %v411
        %v475 = vpop.f32.mrf.mxu0
        %v476 = vadd.f32 0.0, %v475
        %477 = vmatmul.f32.gmra.mxu0 %v414
        %v478 = vpop.f32.mrf.mxu0
        %v479 = vadd.f32 0.0, %v478
        %480 = vmatmul.f32.gmra.mxu0 %v417
        %v481 = vpop.f32.mrf.mxu0
        %v482 = vadd.f32 0.0, %v481
        %483 = vmatmul.f32.gmra.mxu0 %v420
        %v484 = vpop.f32.mrf.mxu0
        %v485 = vadd.f32 0.0, %v484
        %486 = vmatmul.f32.gmra.mxu0 %v423
        %v487 = vpop.f32.mrf.mxu0
        %v488 = vadd.f32 0.0, %v487
        %489 = vmatmul.f32.gmra.mxu0 %v426
        %v490 = vpop.f32.mrf.mxu0
        %v491 = vadd.f32 0.0, %v490
        %492 = vmatmul.f32.gmra.mxu0 %v429
        %v493 = vpop.f32.mrf.mxu0
        %v494 = vadd.f32 0.0, %v493
        %495 = vmatmul.f32.gmra.mxu0 %v432
        %v496 = vpop.f32.mrf.mxu0
        %v497 = vadd.f32 0.0, %v496
        %498 = vdwg.mxu0
        %vm499 = vcmask 15360
        %500 = vst.msk [vmem:[%s277] sm:$0xff] %vm499, %v452
        %501 = vst.msk [vmem:[%s277 + $0x8] sm:$0xff] %vm499, %v455
        %502 = vst.msk [vmem:[%s277 + $0x10] sm:$0xff] %vm499, %v458
        %503 = vst.msk [vmem:[%s277 + $0x18] sm:$0xff] %vm499, %v461
        %504 = vst.msk [vmem:[%s277 + $0x20] sm:$0xff] %vm499, %v464
        %505 = vst.msk [vmem:[%s277 + $0x28] sm:$0xff] %vm499, %v467
        %506 = vst.msk [vmem:[%s277 + $0x30] sm:$0xff] %vm499, %v470
        %507 = vst.msk [vmem:[%s277 + $0x38] sm:$0xff] %vm499, %v473
        %508 = vst.msk [vmem:[%s277 + $0x40] sm:$0xff] %vm499, %v476
        %509 = vst.msk [vmem:[%s277 + $0x48] sm:$0xff] %vm499, %v479
        %510 = vst.msk [vmem:[%s277 + $0x50] sm:$0xff] %vm499, %v482
        %511 = vst.msk [vmem:[%s277 + $0x58] sm:$0xff] %vm499, %v485
        %512 = vst.msk [vmem:[%s277 + $0x60] sm:$0xff] %vm499, %v488
        %513 = vst.msk [vmem:[%s277 + $0x68] sm:$0xff] %vm499, %v491
        %514 = vst.msk [vmem:[%s277 + $0x70] sm:$0xff] %vm499, %v494
        %515 = vst.msk [vmem:[%s277 + $0x78] sm:$0xff] %vm499, %v497
        %v516 = vld [vmem:[%s2] sm:$0x3]
        %v518 = vsel %vm385, %v516, 0
        %520 = vmatpush.xpose.msra.mxu0 %v432
        %521 = vmatpush.xpose.msra.mxu0 %v429
        %522 = vmatpush.xpose.msra.mxu0 %v426
        %523 = vmatpush.xpose.msra.mxu0 %v423
        %524 = vmatpush.xpose.msra.mxu0 %v420
        %525 = vmatpush.xpose.msra.mxu0 %v417
        %526 = vmatpush.xpose.msra.mxu0 %v414
        %527 = vmatpush.xpose.msra.mxu0 %v411
        %528 = vmatpush.xpose.msra.mxu0 %v408
        %529 = vmatpush.xpose.msra.mxu0 %v405
        %530 = vmatpush.xpose.msra.mxu0 %v402
        %531 = vmatpush.xpose.msra.mxu0 %v399
        %532 = vmatpush.xpose.msra.mxu0 %v396
        %533 = vmatpush.xpose.msra.mxu0 %v393
        %534 = vmatpush.xpose.msra.mxu0 %v390
        %535 = vmatpush.xpose.msra.mxu0 %v387
        %536 = vmatmul.f32.gmra.mxu0 %v518
        %v537 = vpop.f32.mrf.mxu0
        %v538 = vadd.f32 0.0, %v537
        %539 = vdwg.mxu0
        %540 = vst [vmem:[%s253] sm:$0x3] %v538
        %v541 = vpack.c.bf16 %v342, %v342
        %v542 = vpack.c.bf16 %v344, %v344
        %v543 = vpack.c.bf16 %v347, %v347
        %v544 = vpack.c.bf16 %v349, %v349
        %v545 = vpack.c.bf16 %v352, %v352
        %v546 = vpack.c.bf16 %v354, %v354
        %v547 = vpack.c.bf16 %v357, %v357
        %v548 = vpack.c.bf16 %v359, %v359
        %v549 = vpack.c.bf16 %v362, %v362
        %v550 = vpack.c.bf16 %v364, %v364
        %v551 = vpack.c.bf16 %v367, %v367
        %v552 = vpack.c.bf16 %v369, %v369
        %v553 = vpack.c.bf16 %v372, %v372
        %v554 = vpack.c.bf16 %v374, %v374
        %v555 = vpack.c.bf16 %v377, %v377
        %v556 = vpack.c.bf16 %v379, %v379
        %vm557 = vcmask 257024
        %558 = vst.msk [vmem:[%s271] sm:$0xf] %vm557, %v541
        %559 = vst.msk [vmem:[%s271 + $0x4] sm:$0xf] %vm557, %v542
        %560 = vst.msk [vmem:[%s271 + $0x8] sm:$0xf] %vm557, %v543
        %561 = vst.msk [vmem:[%s271 + $0xc] sm:$0xf] %vm557, %v544
        %562 = vst.msk [vmem:[%s271 + $0x10] sm:$0xf] %vm557, %v545
        %563 = vst.msk [vmem:[%s271 + $0x14] sm:$0xf] %vm557, %v546
        %564 = vst.msk [vmem:[%s271 + $0x18] sm:$0xf] %vm557, %v547
        %565 = vst.msk [vmem:[%s271 + $0x1c] sm:$0xf] %vm557, %v548
        %566 = vst.msk [vmem:[%s271 + $0x20] sm:$0xf] %vm557, %v549
        %567 = vst.msk [vmem:[%s271 + $0x24] sm:$0xf] %vm557, %v550
        %568 = vst.msk [vmem:[%s271 + $0x28] sm:$0xf] %vm557, %v551
        %569 = vst.msk [vmem:[%s271 + $0x2c] sm:$0xf] %vm557, %v552
        %570 = vst.msk [vmem:[%s271 + $0x30] sm:$0xf] %vm557, %v553
        %571 = vst.msk [vmem:[%s271 + $0x34] sm:$0xf] %vm557, %v554
        %572 = vst.msk [vmem:[%s271 + $0x38] sm:$0xf] %vm557, %v555
        %573 = vst.msk [vmem:[%s271 + $0x3c] sm:$0xf] %vm557, %v556
        %s574 = smul.u32 16, %s21
        %p575 = scmp.lt.s32.totalorder %s574, 31
        %s576 = scalar_select %p575, %s574, 31
        %s577 = smul.addr %s576, 4
        %s578 = scalar_lea.vmem %s4, %s577
        %s579 = sand.u32 %s144, 1
        %s580 = scalar_lea.sflag [#allocation3], %s579
        %s581 = sand.u32 %s144, 1
        %s582 = smul.addr %s581, 2
        %s583 = scalar_lea.vmem [#allocation2], %s582
        %s584 = smul.u32 16, %s21
        %p585 = scmp.lt.s32.totalorder %s584, 31
        %s586 = scalar_select %p585, %s584, 31
        %s587 = smul.addr %s586, 8
        %s588 = scalar_lea.vmem %s6, %s587
        // Predicated region
        $region37: #{tpu_custom_call.1} parent=35 // pred_check
          %p589 = pneg %p128
        $region38: #{tpu_custom_call.1} parent=35 // pred_check_branch
          %591 = sbr.rel (%p589) target = $region40
        $region39: #{tpu_custom_call.1} parent=35 // pred_region
          %s592 = smul.u32 16, %s21
        $region40: #{tpu_custom_call.1} parent=35 // pred_fallthru
          _
        // Predicated region
        $region41: #{tpu_custom_call.1} parent=35 // pred_check
          %p593 = pneg %p154
        $region42: #{tpu_custom_call.1} parent=35 // pred_check_branch
          %595 = sbr.rel (%p593) target = $region44
        $region43: #{tpu_custom_call.1} parent=35 // pred_region
          %597 = vsyncadd %s580, 0
          %s598 = smul.addr %s21, 2
          %s599 = scalar_lea.hbm %s5, %s598
          %s601 = sshll.u32 %s583, 4
          %s602 = int_to_ptr.vmem [resolvable:$true] %s601
          %s603 = sshll.u32 %s599, 4
          %s604 = int_to_ptr.hbm [resolvable:$true] %s603
          %606 = dma.vmem_to_hbm [thread:$0]  %s602, 32, %s604, %s580
        $region44: #{tpu_custom_call.1} parent=35 // pred_fallthru
          _
        // Predicated region
        $region45: #{tpu_custom_call.1} parent=35 // pred_check
          %p607 = pneg %p180
        $region46: #{tpu_custom_call.1} parent=35 // pred_check_branch
          %609 = sbr.rel (%p607) target = $region48
        $region47: #{tpu_custom_call.1} parent=35 // pred_region
          %s610 = smul.u32 16, %s21
        $region48: #{tpu_custom_call.1} parent=35 // pred_fallthru
          _
      $region36: #{tpu_custom_call.1} parent=5 // pred_fallthru
        _
      %p611 = scmp.le.s32.totalorder 2, %s16
      // Predicated region
      $region49: #{tpu_custom_call.1} parent=5 // pred_check
        %p612 = pneg %p611
      $region50: #{tpu_custom_call.1} parent=5 // pred_check_branch
        %614 = sbr.rel (%p612) target = $region52
      $region51: #{tpu_custom_call.1} parent=5 // pred_region
        %s615 = ssub.s32 %s16, 2
        // Predicated region
        $region53: #{tpu_custom_call.1} parent=51 // pred_check
          %p616 = pneg %p134
        $region54: #{tpu_custom_call.1} parent=51 // pred_check_branch
          %618 = sbr.rel (%p616) target = $region56
        $region55: #{tpu_custom_call.1} parent=51 // pred_region
          %s619 = smul.u32 16, %s22
          %p620 = scmp.lt.s32.totalorder %s619, 31
          %s621 = scalar_select %p620, %s619, 31
          %s622 = smul.addr %s621, 4
          %s623 = scalar_lea.vmem %s4, %s622
        $region56: #{tpu_custom_call.1} parent=51 // pred_fallthru
          _
        // Predicated region
        $region57: #{tpu_custom_call.1} parent=51 // pred_check
          %p624 = pneg %p160
        $region58: #{tpu_custom_call.1} parent=51 // pred_check_branch
          %626 = sbr.rel (%p624) target = $region60
        $region59: #{tpu_custom_call.1} parent=51 // pred_region
          %s627 = sand.u32 %s145, 1
          %s628 = scalar_lea.sflag [#allocation3], %s627
          %s629 = sand.u32 %s145, 1
          %s630 = smul.addr %s629, 2
          %s631 = scalar_lea.vmem [#allocation2], %s630
          %633 = dma.done %s628, 32
        $region60: #{tpu_custom_call.1} parent=51 // pred_fallthru
          _
        // Predicated region
        $region61: #{tpu_custom_call.1} parent=51 // pred_check
          %p634 = pneg %p186
        $region62: #{tpu_custom_call.1} parent=51 // pred_check_branch
          %636 = sbr.rel (%p634) target = $region64
        $region63: #{tpu_custom_call.1} parent=51 // pred_region
          %s637 = smul.u32 16, %s22
          %p638 = scmp.lt.s32.totalorder %s637, 31
          %s639 = scalar_select %p638, %s637, 31
          %s640 = smul.addr %s639, 8
          %s641 = scalar_lea.vmem %s6, %s640
        $region64: #{tpu_custom_call.1} parent=51 // pred_fallthru
          _
      $region52: #{tpu_custom_call.1} parent=5 // pred_fallthru
        _
    $region6: #{tpu_custom_call.1} parent=1 // loop_footer
      %s20 = sadd.s32 1, %s16
    $region7: #{tpu_custom_call.1} parent=1 // loop_footer_branch
      %15 = sbr.rel target = $region3
    $region8: #{tpu_custom_call.1} parent=1 // loop_exit
      _
    %642 = vsyncpa [#allocation3], 1
    %s643 = scalar_lea.sflag [#allocation3], 1
    %644 = vsyncpa %s643, 1

</llo_original>
